<compile_context>
chip_gen: v5e
topology: v5e:2x2
jax: 0.10.0
libtpu: 0.0.40
codegen_flags: <defaults>
</compile_context>

<pallas_src>
from functools import partial

import jax
import jax.numpy as jnp
from jax import lax
from jax.experimental import pallas as pl
from jax.experimental.pallas import tpu as pltpu

EPS = 1e-5


def _residual_kernel(x_ref, w_ref, pk_ref, o_ref, *, tb, channels_last):
    # x_ref block: (tb, C, HW) channels-first or (tb, HW, C) channels-last.
    # w_ref:  (C, C)  -- W' (channels-first) or W'^T (channels-last), x.dtype.
    # pk_ref: packed constants, f32: (C, 2) [b', wsum] or (2, C).
    w = w_ref[...]
    pk = pk_ref[...]
    if channels_last:
        bvec = pk[0:1, :]          # (1, C)
        wsum = pk[1:2, :]          # (1, C)
    else:
        bvec = pk[:, 0:1]          # (C, 1)
        wsum = pk[:, 1:2]          # (C, 1)

    def body(s, carry):
        x_in = x_ref[s]                                   # 2-D, native dtype
        x = x_in.astype(jnp.float32)
        n = x.shape[0] * x.shape[1]

        # Shifted one-pass stats (GroupNorm with num_groups=1 normalizes over
        # all of C*H*W).  Shift by the first element to avoid cancellation.
        pivot = x[0:1, 0:1]                               # (1, 1)
        xs = x - pivot
        s1 = jnp.sum(xs, axis=(0, 1), keepdims=True)      # (1, 1)
        s2 = jnp.sum(xs * xs, axis=(0, 1), keepdims=True) # (1, 1)
        mu_s = s1 / n
        mean = pivot + mu_s
        var = jnp.maximum(s2 / n - mu_s * mu_s, 0.0)
        inv = lax.rsqrt(var + EPS)                        # (1, 1)

        # Channel mix on RAW x (MXU); independent of the stats above, so the
        # scheduler can overlap the reduction with the matmul.
        if channels_last:
            m = jnp.dot(x_in, w, preferred_element_type=jnp.float32)  # (HW, C)
        else:
            m = jnp.dot(w, x_in, preferred_element_type=jnp.float32)  # (C, HW)

        const = bvec - (inv * mean) * wsum                # per-channel
        o_ref[s] = (inv * m + const + x).astype(o_ref.dtype)
        return carry

    lax.fori_loop(0, tb, body, 0, unroll=True)


def residual_prenorm_conv1x1(x, gamma, beta, w, b):
    """out = Conv1x1(GroupNorm(1, C)(x)) + x.   x: (B,C,H,W) NCHW."""
    B, C, H, W = x.shape
    HW = H * W

    # Fold GroupNorm affine + conv bias into the weight (f32, exact).
    w_p = w.astype(jnp.float32) * gamma.astype(jnp.float32)[None, :]   # W'
    b_p = w.astype(jnp.float32) @ beta.astype(jnp.float32) + b.astype(jnp.float32)
    wsum = jnp.sum(w_p, axis=1)

    # Layout: keep the kernel's output last dim lane-dense (multiple of 128).
    channels_last = (HW % 128 != 0) and (C % 128 == 0)
    # TODO(synk): pad/fold spatial when neither HW nor C is lane-dense.

    if channels_last:
        x2 = x.reshape(B, C, HW).transpose(0, 2, 1)                # (B, HW, C)
        w_f = jnp.asarray(w_p.T, dtype=x.dtype)                    # x @ W'^T
        pk = jnp.stack([b_p, wsum], axis=0).astype(jnp.float32)    # (2, C)
        inner = (HW, C)
    else:
        x2 = x.reshape(B, C, HW)                                   # (B, C, HW)
        w_f = jnp.asarray(w_p, dtype=x.dtype)
        pk = jnp.stack([b_p, wsum], axis=1).astype(jnp.float32)    # (C, 2)
        inner = (C, HW)

    # --- generation-aware VMEM budgeting ---------------------------------
    try:
        vmem_cap = int(pltpu.get_tpu_info().vmem_capacity_bytes)
    except Exception:
        vmem_cap = 64 << 20          # most conservative (v7x per-TensorCore)

    itemsize = x2.dtype.itemsize
    sample_bytes = C * HW * itemsize
    f32_temps = 4 * C * HW * 4                 # x cast, shifted, matmul acc, y
    fixed = 2 * C * C * w_f.dtype.itemsize + 2 * pk.size * 4
    budget = int(vmem_cap * 0.7)

    def footprint(tb):                         # in + out, double-buffered
        return 4 * tb * sample_bytes + f32_temps + fixed

    # >= 2 grid steps whenever B >= 2 (keeps v7x's 2nd TensorCore busy);
    # cap the unrolled per-sample loop length.
    tb_cap = min(max(1, B // 2) if B >= 2 else 1, 8)
    tb = 1
    for cand in range(tb_cap, 0, -1):
        if footprint(cand) <= budget:
            tb = cand
            break
    # TODO(synk): if even a single sample exceeds the budget, switch to an
    # HW-tiled grid axis with accumulated stats instead of raising the limit.
    vmem_limit = min(int(vmem_cap * 0.9),
                     max(footprint(tb) + (8 << 20), 32 << 20))

    grid = (pl.cdiv(B, tb),)
    kernel = partial(_residual_kernel, tb=tb, channels_last=channels_last)

    out = pl.pallas_call(
        kernel,
        out_shape=jax.ShapeDtypeStruct((B,) + inner, x.dtype),
        grid_spec=pltpu.PrefetchScalarGridSpec(
            num_scalar_prefetch=0,
            grid=grid,
            in_specs=[
                pl.BlockSpec((tb,) + inner, lambda i: (i, 0, 0)),   # x
                pl.BlockSpec((C, C), lambda i: (0, 0)),             # W' / W'^T
                pl.BlockSpec(pk.shape, lambda i: (0, 0)),           # [b', wsum]
            ],
            out_specs=pl.BlockSpec((tb,) + inner, lambda i: (i, 0, 0)),
        ),
        compiler_params=pltpu.CompilerParams(
            dimension_semantics=("parallel",),
            vmem_limit_bytes=vmem_limit,
        ),
    )(x2, w_f, pk)

    if channels_last:
        out = out.transpose(0, 2, 1)
    return out.reshape(B, C, H, W)


def residual_reference(x, gamma, beta, w, b):
    """Pure-JAX reference: Conv1x1(GroupNorm(1, C)(x)) + x."""
    B, C, H, W = x.shape
    xf = x.astype(jnp.float32).reshape(B, -1)
    mean = xf.mean(axis=1, keepdims=True)
    var = ((xf - mean) ** 2).mean(axis=1, keepdims=True)
    xn = ((xf - mean) / jnp.sqrt(var + EPS)).reshape(B, C, H, W)
    xn = xn * gamma.reshape(1, C, 1, 1) + beta.reshape(1, C, 1, 1)
    y = jnp.einsum("oc,bchw->bohw", w, xn) + b.reshape(1, C, 1, 1)
    return (y + x.astype(jnp.float32)).astype(x.dtype)


if __name__ == "__main__":
    key = jax.random.PRNGKey(0)

    def make_params(k, C):
        k_g, k_b, k_w, k_c = jax.random.split(k, 4)
        gamma = 1.0 + 0.1 * jax.random.normal(k_g, (C,), dtype=jnp.float32)
        beta = 0.1 * jax.random.normal(k_b, (C,), dtype=jnp.float32)
        w = jax.random.normal(k_w, (C, C), dtype=jnp.float32) / jnp.sqrt(C)
        b = 0.1 * jax.random.normal(k_c, (C,), dtype=jnp.float32)
        return gamma, beta, w, b

    k1, k2, kx1, kx2 = jax.random.split(key, 4)

    # Case 1: channels-first layout (HW = 256 is lane-dense), 2 grid steps.
    B, C, H, W = 2, 4, 16, 16
    x = jax.random.normal(kx1, (B, C, H, W), dtype=jnp.float32)
    gamma, beta, w, b = make_params(k1, C)
    out = residual_prenorm_conv1x1(x, gamma, beta, w, b)
    jax.block_until_ready(out)
    ref = residual_reference(x, gamma, beta, w, b)
    assert out.shape == (B, C, H, W)
    assert jnp.allclose(out, ref, atol=1e-4, rtol=1e-4)

    # Case 2: channels-last layout (HW = 64 < 128, C = 128 lane-dense).
    B2, C2, H2, W2 = 2, 128, 8, 8
    x2 = jax.random.normal(kx2, (B2, C2, H2, W2), dtype=jnp.float32)
    gamma2, beta2, w2, b2 = make_params(k2, C2)
    out2 = residual_prenorm_conv1x1(x2, gamma2, beta2, w2, b2)
    jax.block_until_ready(out2)
    ref2 = residual_reference(x2, gamma2, beta2, w2, b2)
    assert jnp.allclose(out2, ref2, atol=1e-4, rtol=1e-4)

    print("KERNEL_OK")
</pallas_src>

<mosaic_0001>
module attributes {stable_mosaic.version = 11 : i64} {
  func.func @_residual_kernel(%arg0: i32, %arg1: memref<1x4x256xf32, #tpu.memory_space<vmem>>, %arg2: memref<4x4xf32, #tpu.memory_space<vmem>>, %arg3: memref<4x2xf32, #tpu.memory_space<vmem>>, %arg4: memref<1x4x256xf32, #tpu.memory_space<vmem>>) attributes {dimension_semantics = [#tpu.dimension_semantics<parallel>], iteration_bounds = array<i64: 2>, scalar_prefetch = 0 : i64, scratch_operands = 0 : i64, tpu.core_type = #tpu.core_type<tc>, window_params = [{transform_indices = @transform_0, window_bounds = array<i64: 1, 4, 256>}, {pipeline_mode = #tpu.pipeline_mode<synchronous>, transform_indices = @transform_1, window_bounds = array<i64: 4, 4>}, {pipeline_mode = #tpu.pipeline_mode<synchronous>, transform_indices = @transform_2, window_bounds = array<i64: 4, 2>}, {transform_indices = @transform_3, window_bounds = array<i64: 1, 4, 256>}]} {
    %c0 = arith.constant 0 : index
    %c0_0 = arith.constant 0 : index
    %0 = vector.load %arg2[%c0, %c0_0] : memref<4x4xf32, #tpu.memory_space<vmem>>, vector<4x4xf32>
    %c0_1 = arith.constant 0 : index
    %c0_2 = arith.constant 0 : index
    %1 = vector.load %arg3[%c0_1, %c0_2] : memref<4x2xf32, #tpu.memory_space<vmem>>, vector<4x2xf32>
    %2 = vector.extract_strided_slice %1 {offsets = [0, 0], sizes = [4, 1], strides = [1, 1]} : vector<4x2xf32> to vector<4x1xf32>
    %3 = vector.extract_strided_slice %1 {offsets = [0, 1], sizes = [4, 1], strides = [1, 1]} : vector<4x2xf32> to vector<4x1xf32>
    %c0_i32 = arith.constant 0 : i32
    %4 = arith.index_cast %c0_i32 : i32 to index
    %c0_3 = arith.constant 0 : index
    %c0_4 = arith.constant 0 : index
    %5 = vector.load %arg1[%4, %c0_3, %c0_4] : memref<1x4x256xf32, #tpu.memory_space<vmem>>, vector<1x4x256xf32>
    %6 = vector.shape_cast %5 : vector<1x4x256xf32> to vector<4x256xf32>
    %7 = vector.extract_strided_slice %6 {offsets = [0, 0], sizes = [1, 1], strides = [1, 1]} : vector<4x256xf32> to vector<1x1xf32>
    %8 = vector.broadcast %7 : vector<1x1xf32> to vector<4x256xf32>
    %9 = arith.subf %6, %8 : vector<4x256xf32>
    %10 = vector.shape_cast %9 : vector<4x256xf32> to vector<1x4x256xf32>
    %cst = arith.constant dense<0.000000e+00> : vector<1xf32>
    %11 = vector.multi_reduction <add>, %10, %cst [1, 2] : vector<1x4x256xf32> to vector<1xf32>
    %12 = vector.shape_cast %11 : vector<1xf32> to vector<1x1x1xf32>
    %13 = vector.extract %12[0, 0, 0] : f32 from vector<1x1x1xf32>
    %14 = vector.broadcast %13 : f32 to vector<1x1xf32>
    %15 = arith.mulf %9, %9 : vector<4x256xf32>
    %16 = vector.shape_cast %15 : vector<4x256xf32> to vector<1x4x256xf32>
    %cst_5 = arith.constant dense<0.000000e+00> : vector<1xf32>
    %17 = vector.multi_reduction <add>, %16, %cst_5 [1, 2] : vector<1x4x256xf32> to vector<1xf32>
    %18 = vector.shape_cast %17 : vector<1xf32> to vector<1x1x1xf32>
    %19 = vector.extract %18[0, 0, 0] : f32 from vector<1x1x1xf32>
    %20 = vector.broadcast %19 : f32 to vector<1x1xf32>
    %cst_6 = arith.constant 1.024000e+03 : f32
    %21 = vector.broadcast %cst_6 : f32 to vector<1x1xf32>
    %22 = arith.divf %14, %21 : vector<1x1xf32>
    %23 = arith.addf %7, %22 : vector<1x1xf32>
    %cst_7 = arith.constant 1.024000e+03 : f32
    %24 = vector.broadcast %cst_7 : f32 to vector<1x1xf32>
    %25 = arith.divf %20, %24 : vector<1x1xf32>
    %26 = arith.mulf %22, %22 : vector<1x1xf32>
    %27 = arith.subf %25, %26 : vector<1x1xf32>
    %cst_8 = arith.constant 0.000000e+00 : f32
    %28 = vector.broadcast %cst_8 : f32 to vector<1x1xf32>
    %29 = arith.maximumf %27, %28 : vector<1x1xf32>
    %cst_9 = arith.constant 9.99999974E-6 : f32
    %30 = vector.broadcast %cst_9 : f32 to vector<1x1xf32>
    %31 = arith.addf %29, %30 : vector<1x1xf32>
    %32 = math.rsqrt %31 : vector<1x1xf32>
    %cst_10 = arith.constant dense<0.000000e+00> : vector<4x256xf32>
    %33 = tpu.matmul %0, %6, %cst_10 {dimension_numbers = #tpu.dot_dimension_numbers<[1], [0], [0], [1], [0, 0, 1, 1], [], []>} : vector<4x4xf32>, vector<4x256xf32>, vector<4x256xf32> -> vector<4x256xf32>
    %34 = arith.mulf %32, %23 : vector<1x1xf32>
    %35 = vector.broadcast %34 : vector<1x1xf32> to vector<4x1xf32>
    %36 = arith.mulf %35, %3 : vector<4x1xf32>
    %37 = arith.subf %2, %36 : vector<4x1xf32>
    %38 = vector.broadcast %32 : vector<1x1xf32> to vector<4x256xf32>
    %39 = arith.mulf %38, %33 : vector<4x256xf32>
    %40 = vector.broadcast %37 : vector<4x1xf32> to vector<4x256xf32>
    %41 = arith.addf %39, %40 : vector<4x256xf32>
    %42 = arith.addf %41, %6 : vector<4x256xf32>
    %43 = arith.index_cast %c0_i32 : i32 to index
    %c0_11 = arith.constant 0 : index
    %c0_12 = arith.constant 0 : index
    %44 = vector.load %arg4[%43, %c0_11, %c0_12] : memref<1x4x256xf32, #tpu.memory_space<vmem>>, vector<1x4x256xf32>
    %45 = vector.shape_cast %44 : vector<1x4x256xf32> to vector<4x256xf32>
    %46 = vector.shape_cast %42 : vector<4x256xf32> to vector<1x4x256xf32>
    tpu.vector_store %arg4[%43, %c0_11, %c0_12], %46 {strides = array<i32>} : memref<1x4x256xf32, #tpu.memory_space<vmem>>, vector<1x4x256xf32>,
    %c1_i32 = arith.constant 1 : i32
    return
  }
  func.func @transform_0(%arg0: i32) -> (i32, i32, i32) {
    %c0_i32 = arith.constant 0 : i32
    %c0_i32_0 = arith.constant 0 : i32
    %c0_i32_1 = arith.constant 0 : i32
    return %arg0, %c0_i32, %c0_i32_0 : i32, i32, i32
  }
  func.func @transform_1(%arg0: i32) -> (i32, i32) {
    %c0_i32 = arith.constant 0 : i32
    %c0_i32_0 = arith.constant 0 : i32
    %c0_i32_1 = arith.constant 0 : i32
    return %c0_i32, %c0_i32_0 : i32, i32
  }
  func.func @transform_2(%arg0: i32) -> (i32, i32) {
    %c0_i32 = arith.constant 0 : i32
    %c0_i32_0 = arith.constant 0 : i32
    %c0_i32_1 = arith.constant 0 : i32
    return %c0_i32, %c0_i32_0 : i32, i32
  }
  func.func @transform_3(%arg0: i32) -> (i32, i32, i32) {
    %c0_i32 = arith.constant 0 : i32
    %c0_i32_0 = arith.constant 0 : i32
    %c0_i32_1 = arith.constant 0 : i32
    return %arg0, %c0_i32, %c0_i32_0 : i32, i32, i32
  }
}

</mosaic_0001>

<llo_original>
// kernel: tpu_custom_call.1
$region0: #{tpu_custom_call.1}
  #allocation0 [shape = 'u32[]', space=smem, size = 0x4, offset = 0x4, fixed_abs, tag = 'smem constant byte address 0x4 - core index']
  #allocation1 [shape = 'u32[72,128]{1,0:T(1,128)}', space=vmem, size = 0x9000, scoped, tag = 'internal scratch']
  %s0 = inlined_call_operand.hbm [shape: f32[2,4,256], index: 0, kind: input, shape index: {}]
  %s1 = inlined_call_operand.vmem [shape: f32[4,4], index: 1, kind: input, shape index: {}]
  %s2 = inlined_call_operand.vmem [shape: f32[4,2], index: 2, kind: input, shape index: {}]
  %s3 = inlined_call_operand.hbm [shape: f32[2,4,256], index: 3, kind: output, shape index: {}]
  %s4 = sld [smem:[#allocation0]]
  $region49: #{tpu_custom_call.1} parent=0
    _
  %s6 = ssub.s32 1, %s4
  %s7 = scalar_select 0, %s6, %s4
  $region1: #{tpu_custom_call.1} parent=0
    #allocation2 [shape = 'u8[8192]{0}', space=vmem, size = 0x2000, scoped, tag = 'input window, operand 0']
    #allocation3 [shape = 's32[2]{0}', space=sflag, size = 0x8, scoped, tag = 'scoped memory for tpu_custom_call.1']
    #allocation4 [shape = 's32[2]{0}', space=sflag, size = 0x8, scoped, tag = 'scoped memory for tpu_custom_call.1']
    #allocation5 [shape = 'u8[8192]{0}', space=vmem, size = 0x2000, scoped, tag = 'output window, operand 0']
    %8 = vsyncpa [#allocation3], 0
    %s9 = scalar_lea.sflag [#allocation3], 1
    %10 = vsyncpa %s9, 0
    %11 = vsyncpa [#allocation4], 0
    %s12 = scalar_lea.sflag [#allocation4], 1
    %13 = vsyncpa %s12, 0
    loop: start=0, step=1, limit=4
    $region2: #{tpu_custom_call.1} parent=1 // loop_pre_header
      _
    $region3: #{tpu_custom_call.1} parent=1 // loop_header
      %s15 = sphi 0, %s19
      %p16 = scmp.ge.s32.totalorder %s15, 4
      %s25 = sphi 0, %s27
      %s28 = sphi 0, %s25
      %s29 = sphi 0, %s28
      %s45 = sphi 0, %s29
      %s49 = sphi 0, %s49
      %s51 = sphi 0, %s49
      %s52 = sphi 0, %s51
      %s66 = sphi 0, %s52
      %s70 = sphi 0, %s70
      %s72 = sphi 0, %s70
      %s73 = sphi 0, %s72
      %s87 = sphi 0, %s73
      %s93 = sphi 0, %s95
      %s96 = sphi 0, %s93
      %s97 = sphi 0, %s96
      %s113 = sphi 0, %s97
    $region4: #{tpu_custom_call.1} parent=1 // loop_header_branch
      %18 = sbr.rel (%p16) target = $region8
    $region5: #{tpu_custom_call.1} parent=1 // loop_body
      %s20 = ssub.s32 %s15, 1
      %s21 = ssub.s32 %s15, 2
      %s22 = sadd.s32 %s15, 1
      %s23 = ssub.s32 %s15, %s22
      %p24 = scmp.eq.s32.totalorder %s23, 0
      %s26 = sadd.s32 %s25, 1
      %s27 = scalar_select %p24, %s25, %s26
      %p30 = pneg %p24
      %p31 = scmp.eq.s32.totalorder %s15, 1
      %p32 = por %p30, %p31
      %p33 = scmp.ne.s32.totalorder %s25, %s28
      %p34 = scmp.eq.s32.totalorder %s15, 0
      %p35 = por %p33, %p34
      %p36 = scmp.ne.s32.totalorder %s25, %s28
      %p37 = scmp.eq.s32.totalorder %s20, 1
      %p38 = por %p36, %p37
      %p39 = scmp.ne.s32.totalorder %s28, %s29
      %p40 = scmp.eq.s32.totalorder %s20, 0
      %p41 = por %p39, %p40
      %p42 = scmp.ne.s32.totalorder %s28, %s29
      %p43 = scmp.eq.s32.totalorder %s21, 1
      %p44 = por %p42, %p43
      %p46 = scmp.ne.s32.totalorder %s29, %s45
      %p47 = scmp.eq.s32.totalorder %s21, 0
      %p48 = por %p46, %p47
      %s50 = sadd.s32 %s49, 1
      %p53 = scmp.eq.s32.totalorder %s15, 1
      %p54 = scmp.ne.s32.totalorder %s49, %s51
      %p55 = scmp.eq.s32.totalorder %s15, 0
      %p56 = por %p54, %p55
      %p57 = scmp.ne.s32.totalorder %s49, %s51
      %p58 = scmp.eq.s32.totalorder %s20, 1
      %p59 = por %p57, %p58
      %p60 = scmp.ne.s32.totalorder %s51, %s52
      %p61 = scmp.eq.s32.totalorder %s20, 0
      %p62 = por %p60, %p61
      %p63 = scmp.ne.s32.totalorder %s51, %s52
      %p64 = scmp.eq.s32.totalorder %s21, 1
      %p65 = por %p63, %p64
      %p67 = scmp.ne.s32.totalorder %s52, %s66
      %p68 = scmp.eq.s32.totalorder %s21, 0
      %p69 = por %p67, %p68
      %s71 = sadd.s32 %s70, 1
      %p74 = scmp.eq.s32.totalorder %s15, 1
      %p75 = scmp.ne.s32.totalorder %s70, %s72
      %p76 = scmp.eq.s32.totalorder %s15, 0
      %p77 = por %p75, %p76
      %p78 = scmp.ne.s32.totalorder %s70, %s72
      %p79 = scmp.eq.s32.totalorder %s20, 1
      %p80 = por %p78, %p79
      %p81 = scmp.ne.s32.totalorder %s72, %s73
      %p82 = scmp.eq.s32.totalorder %s20, 0
      %p83 = por %p81, %p82
      %p84 = scmp.ne.s32.totalorder %s72, %s73
      %p85 = scmp.eq.s32.totalorder %s21, 1
      %p86 = por %p84, %p85
      %p88 = scmp.ne.s32.totalorder %s73, %s87
      %p89 = scmp.eq.s32.totalorder %s21, 0
      %p90 = por %p88, %p89
      %s91 = ssub.s32 %s15, %s22
      %p92 = scmp.eq.s32.totalorder %s91, 0
      %s94 = sadd.s32 %s93, 1
      %s95 = scalar_select %p92, %s93, %s94
      %p98 = pneg %p92
      %p99 = scmp.eq.s32.totalorder %s15, 1
      %p100 = por %p98, %p99
      %p101 = scmp.ne.s32.totalorder %s93, %s96
      %p102 = scmp.eq.s32.totalorder %s15, 0
      %p103 = por %p101, %p102
      %p104 = scmp.ne.s32.totalorder %s93, %s96
      %p105 = scmp.eq.s32.totalorder %s20, 1
      %p106 = por %p104, %p105
      %p107 = scmp.ne.s32.totalorder %s96, %s97
      %p108 = scmp.eq.s32.totalorder %s20, 0
      %p109 = por %p107, %p108
      %p110 = scmp.ne.s32.totalorder %s96, %s97
      %p111 = scmp.eq.s32.totalorder %s21, 1
      %p112 = por %p110, %p111
      %p114 = scmp.ne.s32.totalorder %s97, %s113
      %p115 = scmp.eq.s32.totalorder %s21, 0
      %p116 = por %p114, %p115
      %p117 = scmp.le.s32.totalorder 1, %s15
      %p118 = scmp.lt.s32.totalorder %s15, 3
      %p119 = pnand %p117, %p118
      %p120 = pneg %p119
      // Predicated region
      $region9: #{tpu_custom_call.1} parent=5 // pred_check
        _
      $region10: #{tpu_custom_call.1} parent=5 // pred_check_branch
        %122 = sbr.rel (%p119) target = $region12
      $region11: #{tpu_custom_call.1} parent=5 // pred_region
        %s123 = ssub.s32 %s15, 1
        // Predicated region
        $region13: #{tpu_custom_call.1} parent=11 // pred_check
          %p124 = pneg %p62
        $region14: #{tpu_custom_call.1} parent=11 // pred_check_branch
          %126 = sbr.rel (%p124) target = $region16
        $region15: #{tpu_custom_call.1} parent=11 // pred_region
          _
        $region16: #{tpu_custom_call.1} parent=11 // pred_fallthru
          _
        // Predicated region
        $region17: #{tpu_custom_call.1} parent=11 // pred_check
          %p127 = pneg %p83
        $region18: #{tpu_custom_call.1} parent=11 // pred_check_branch
          %129 = sbr.rel (%p127) target = $region20
        $region19: #{tpu_custom_call.1} parent=11 // pred_region
          _
        $region20: #{tpu_custom_call.1} parent=11 // pred_fallthru
          _
      $region12: #{tpu_custom_call.1} parent=5 // pred_fallthru
        _
      %p130 = scmp.lt.s32.totalorder %s15, 2
      // Predicated region
      $region21: #{tpu_custom_call.1} parent=5 // pred_check
        %p131 = pneg %p130
      $region22: #{tpu_custom_call.1} parent=5 // pred_check_branch
        %133 = sbr.rel (%p131) target = $region24
      $region23: #{tpu_custom_call.1} parent=5 // pred_region
        // Predicated region
        $region25: #{tpu_custom_call.1} parent=23 // pred_check
          %p134 = pneg %p35
        $region26: #{tpu_custom_call.1} parent=23 // pred_check_branch
          %136 = sbr.rel (%p134) target = $region28
        $region27: #{tpu_custom_call.1} parent=23 // pred_region
          %s137 = sand.u32 %s25, 1
          %s138 = scalar_lea.sflag [#allocation3], %s137
          %s139 = sand.u32 %s25, 1
          %s140 = smul.addr %s139, 8
          %s141 = scalar_lea.vmem [#allocation2], %s140
          %143 = vsyncadd %s138, 0
          %s144 = smul.addr %s15, 2
          %s145 = smul.addr %s144, 4
          %s146 = scalar_lea.hbm %s0, %s145
          %s148 = sshll.u32 %s146, 4
          %s149 = int_to_ptr.hbm [resolvable:$true] %s148
          %s150 = sshll.u32 %s141, 4
          %s151 = int_to_ptr.vmem [resolvable:$true] %s150
          %153 = dma.hbm_to_vmem [thread:$0]  %s149, 128, %s151, %s138
        $region28: #{tpu_custom_call.1} parent=23 // pred_fallthru
          _
      $region24: #{tpu_custom_call.1} parent=5 // pred_fallthru
        _
      %p154 = scmp.le.s32.totalorder 1, %s15
      %p155 = scmp.lt.s32.totalorder %s15, 3
      %p156 = pnand %p154, %p155
      %p157 = pneg %p156
      // Predicated region
      $region29: #{tpu_custom_call.1} parent=5 // pred_check
        _
      $region30: #{tpu_custom_call.1} parent=5 // pred_check_branch
        %159 = sbr.rel (%p156) target = $region32
      $region31: #{tpu_custom_call.1} parent=5 // pred_region
        %s160 = ssub.s32 %s15, 1
        %s161 = sand.u32 %s28, 1
        %s162 = scalar_lea.sflag [#allocation3], %s161
        %s163 = sand.u32 %s28, 1
        %s164 = smul.addr %s163, 8
        %s165 = scalar_lea.vmem [#allocation2], %s164
        // Predicated region
        $region33: #{tpu_custom_call.1} parent=31 // pred_check
          %p166 = pneg %p41
        $region34: #{tpu_custom_call.1} parent=31 // pred_check_branch
          %168 = sbr.rel (%p166) target = $region36
        $region35: #{tpu_custom_call.1} parent=31 // pred_region
          %170 = dma.done %s162, 128
        $region36: #{tpu_custom_call.1} parent=31 // pred_fallthru
          _
        %s171 = sand.u32 %s28, 1
        %s172 = scalar_lea.sflag [#allocation3], %s171
        %s173 = sand.u32 %s28, 1
        %s174 = smul.addr %s173, 8
        %s175 = scalar_lea.vmem [#allocation2], %s174
        %p176 = pneg %p41
        %p177 = pneg %p38
        %p178 = pneg %p62
        %p179 = pneg %p59
        %p180 = pneg %p83
        %p181 = pneg %p80
        %p182 = pneg %p109
        %p183 = pneg %p106
        %s184 = sand.u32 %s96, 1
        %s185 = scalar_lea.sflag [#allocation4], %s184
        %s186 = sand.u32 %s96, 1
        %s187 = smul.addr %s186, 8
        %s188 = scalar_lea.vmem [#allocation5], %s187
        %v189 = vld [vmem:[%s1] sm:$0xf]
        %v190 = vld [vmem:[%s2] sm:$0xf]
        %v191 = vld [vmem:[%s165] sm:$0xff]
        %s193 = vtos %v191
        %v194 = vstv %s193
        %v196 = vsub.f32 %v191, %v194
        %198 = vst [vmem:[#allocation1] ss:$2 sm:$0xff] %v196
        %v199 = vld.sshfl [vmem:[#allocation1] sm:$0xff pattern:$0x75316420]
        %v200 = vld.sshfl [vmem:[#allocation1 + $0x8] sm:$0xff pattern:$0x75316420]
        %vm203 = vcmask 1043456
        %v204 = vsel %vm203, %v199, 0.0
        %v205 = vsel %vm203, %v200, 0.0
        %v206 = vadd.f32 %v204, %v205
        %207 = vadd.xlane.f32.xlu0 %v206
        %v208 = vpop.xlane.xlu0 %207
        %v209 = vrot.slane %v208, 4
        %v210 = vadd.f32 %v208, %v209
        %v211 = vrot.slane %v210, 2
        %v212 = vadd.f32 %v210, %v211
        %v213 = vrot.slane %v212, 1
        %v214 = vadd.f32 %v212, %v213
        %s215 = vtos %v214
        %v216 = vstv %s215
        %v217 = vmul.f32 %v196, %v196
        %219 = vst [vmem:[#allocation1] ss:$2 sm:$0xff] %v217
        %v220 = vld.sshfl [vmem:[#allocation1] sm:$0xff pattern:$0x75316420]
        %v221 = vld.sshfl [vmem:[#allocation1 + $0x8] sm:$0xff pattern:$0x75316420]
        %v224 = vsel %vm203, %v220, 0.0
        %v225 = vsel %vm203, %v221, 0.0
        %v226 = vadd.f32 %v224, %v225
        %227 = vadd.xlane.f32.xlu0 %v226
        %v228 = vpop.xlane.xlu0 %227
        %v229 = vrot.slane %v228, 4
        %v230 = vadd.f32 %v228, %v229
        %v231 = vrot.slane %v230, 2
        %v232 = vadd.f32 %v230, %v231
        %v233 = vrot.slane %v232, 1
        %v234 = vadd.f32 %v232, %v233
        %s235 = vtos %v234
        %v236 = vstv %s235
        %v237 = vrcp.pop 1024.0
        %v238 = vmul.f32 1024.0, %v237
        %v239 = vsub.f32 1.0, %v238
        %v240 = vmul.f32 %v237, %v239
        %v241 = vadd.f32 %v237, %v240
        %vm242 = vweird.f32 %v237
        %v243 = vsel %vm242, %v237, %v241
        %v244 = vmul.f32 %v216, %v243
        %v245 = vadd.f32 %v191, %v244
        %v246 = vmul.f32 %v236, %v243
        %v247 = vmul.f32 %v244, %v244
        %v248 = vsub.f32 %v246, %v247
        %v249 = vmax.f32 %v248, 0.0
        %v250 = vadd.f32 %v249, 1e-05
        %v251 = vrsqrt.pop %v250
        %v252 = vmul.f32 %v251, %v250
        %v253 = vmul.f32 %v252, %v251
        %v254 = vmul.f32 0.5, %v253
        %v255 = vsub.f32 1.5, %v254
        %v256 = vmul.f32 %v251, %v255
        %vm257 = vweird.f32 %v250
        %vm258 = vweird.f32 %v251
        %vm259 = vmor %vm257, %vm258
        %v260 = vsel %vm259, %v251, %v256
        %261 = vst [vmem:[#allocation1] ss:$2 sm:$0xff] %v191
        %v262 = vld.sshfl [vmem:[#allocation1] sm:$0xff pattern:$0x75316420]
        %v263 = vld.sshfl [vmem:[#allocation1 + $0x8] sm:$0xff pattern:$0x75316420]
        %vm264 = vcmask 31744
        %v266 = vsel %vm264, %v189, 0
        %v268 = vsel %vm203, %v262, 0
        %v270 = vsel %vm203, %v263, 0
        %272 = vmatpush.msra.mxu0 0.0
        %273 = vmatpush.msra.mxu0 0.0
        %274 = vmatpush.msra.mxu0 0.0
        %275 = vmatpush.msra.mxu0 0.0
        %276 = vmatpush.msra.mxu0 0.0
        %277 = vmatpush.msra.mxu0 0.0
        %278 = vmatpush.msra.mxu0 0.0
        %279 = vmatpush.msra.mxu0 0.0
        %280 = vmatpush.msra.mxu0 0.0
        %281 = vmatpush.msra.mxu0 0.0
        %282 = vmatpush.msra.mxu0 0.0
        %283 = vmatpush.msra.mxu0 0.0
        %284 = vmatpush.msra.mxu0 0.0
        %285 = vmatpush.msra.mxu0 0.0
        %286 = vmatpush.msra.mxu0 0.0
        %287 = vmatpush.msra.mxu0 %v268
        %288 = vmatmul.f32.gmra.mxu0 %v266
        %v289 = vpop.f32.mrf.mxu0
        %v290 = vadd.f32 0.0, %v289
        %291 = vdwg.mxu0
        %292 = vmatpush.msra.mxu0 0.0
        %293 = vmatpush.msra.mxu0 0.0
        %294 = vmatpush.msra.mxu0 0.0
        %295 = vmatpush.msra.mxu0 0.0
        %296 = vmatpush.msra.mxu0 0.0
        %297 = vmatpush.msra.mxu0 0.0
        %298 = vmatpush.msra.mxu0 0.0
        %299 = vmatpush.msra.mxu0 0.0
        %300 = vmatpush.msra.mxu0 0.0
        %301 = vmatpush.msra.mxu0 0.0
        %302 = vmatpush.msra.mxu0 0.0
        %303 = vmatpush.msra.mxu0 0.0
        %304 = vmatpush.msra.mxu0 0.0
        %305 = vmatpush.msra.mxu0 0.0
        %306 = vmatpush.msra.mxu0 0.0
        %307 = vmatpush.msra.mxu0 %v270
        %308 = vmatmul.f32.gmra.mxu0 %v266
        %v309 = vpop.f32.mrf.mxu0
        %v310 = vadd.f32 0.0, %v309
        %311 = vdwg.mxu0
        %v312 = vmul.f32 %v260, %v245
        %v313 = vperm.slane %v312, 0
        %315 = vrot.lane.b32.xlu0 %v190, 127
        %v316 = vpop.permute.xlu0 %315
        %v318 = vmul.f32 %v313, %v316
        %v319 = vsub.f32 %v190, %v318
        %v320 = vmul.f32 %v260, %v290
        %v321 = vmul.f32 %v260, %v310
        %323 = vset.pattern.permute.xlu0 0
        %324 = vperm.xlu0 %323, %v319
        %v325 = vpop.permute.xlu0 %324
        %v327 = vadd.f32 %v320, %v325
        %v328 = vadd.f32 %v321, %v325
        %329 = vst [vmem:[#allocation1] ss:$2 sm:$0xff] %v191
        %v330 = vld.sshfl [vmem:[#allocation1] sm:$0xff pattern:$0x75316420]
        %v331 = vld.sshfl [vmem:[#allocation1 + $0x8] sm:$0xff pattern:$0x75316420]
        %v334 = vadd.f32 %v327, %v330
        %v335 = vadd.f32 %v328, %v331
        %v338 = vrot.slane %v335, 4
        %v339 = vsel %vm203, %v334, %v338
        %341 = vst [vmem:[%s188] sm:$0xff] %v339
        %s342 = sand.u32 %s96, 1
        %s343 = scalar_lea.sflag [#allocation4], %s342
        %s344 = sand.u32 %s96, 1
        %s345 = smul.addr %s344, 8
        %s346 = scalar_lea.vmem [#allocation5], %s345
        // Predicated region
        $region37: #{tpu_custom_call.1} parent=31 // pred_check
          %p347 = pneg %p106
        $region38: #{tpu_custom_call.1} parent=31 // pred_check_branch
          %349 = sbr.rel (%p347) target = $region40
        $region39: #{tpu_custom_call.1} parent=31 // pred_region
          %351 = vsyncadd %s343, 0
          %s352 = smul.addr %s20, 2
          %s353 = smul.addr %s352, 4
          %s354 = scalar_lea.hbm %s3, %s353
          %s356 = sshll.u32 %s346, 4
          %s357 = int_to_ptr.vmem [resolvable:$true] %s356
          %s358 = sshll.u32 %s354, 4
          %s359 = int_to_ptr.hbm [resolvable:$true] %s358
          %361 = dma.vmem_to_hbm [thread:$0]  %s357, 128, %s359, %s343
        $region40: #{tpu_custom_call.1} parent=31 // pred_fallthru
          _
      $region32: #{tpu_custom_call.1} parent=5 // pred_fallthru
        _
      %p362 = scmp.le.s32.totalorder 2, %s15
      // Predicated region
      $region41: #{tpu_custom_call.1} parent=5 // pred_check
        %p363 = pneg %p362
      $region42: #{tpu_custom_call.1} parent=5 // pred_check_branch
        %365 = sbr.rel (%p363) target = $region44
      $region43: #{tpu_custom_call.1} parent=5 // pred_region
        %s366 = ssub.s32 %s15, 2
        // Predicated region
        $region45: #{tpu_custom_call.1} parent=43 // pred_check
          %p367 = pneg %p112
        $region46: #{tpu_custom_call.1} parent=43 // pred_check_branch
          %369 = sbr.rel (%p367) target = $region48
        $region47: #{tpu_custom_call.1} parent=43 // pred_region
          %s370 = sand.u32 %s97, 1
          %s371 = scalar_lea.sflag [#allocation4], %s370
          %s372 = sand.u32 %s97, 1
          %s373 = smul.addr %s372, 8
          %s374 = scalar_lea.vmem [#allocation5], %s373
          %376 = dma.done %s371, 128
        $region48: #{tpu_custom_call.1} parent=43 // pred_fallthru
          _
      $region44: #{tpu_custom_call.1} parent=5 // pred_fallthru
        _
    $region6: #{tpu_custom_call.1} parent=1 // loop_footer
      %s19 = sadd.s32 1, %s15
    $region7: #{tpu_custom_call.1} parent=1 // loop_footer_branch
      %14 = sbr.rel target = $region3
    $region8: #{tpu_custom_call.1} parent=1 // loop_exit
      _
    %377 = vsyncpa [#allocation3], 1
    %s378 = scalar_lea.sflag [#allocation3], 1
    %379 = vsyncpa %s378, 1
    %380 = vsyncpa [#allocation4], 1
    %s381 = scalar_lea.sflag [#allocation4], 1
    %382 = vsyncpa %s381, 1

</llo_original>
